<compile_context>
chip_gen: v7x
topology: tpu7x:2x2x1
jax: 0.10.0
libtpu: 0.0.40
codegen_flags: <defaults>
</compile_context>

<pallas_src>
import math

import jax
import jax.numpy as jnp
from jax.experimental import pallas as pl
from jax.experimental.pallas import tpu as pltpu


def _round_up(x, m):
    return ((x + m - 1) // m) * m


def _cdiv(a, b):
    return -(-a // b)


# ---------------------------------------------------------------------------
# Fused kernel
# ---------------------------------------------------------------------------

def _make_fused_kernel(num_layers, e_pad, e_out):
    """Fused encoder: [Linear+ReLU]*num_layers -> combined (fc1|fc2) head.

    Ref order: x, (W_i, b_i)*num_layers, W_head, b_head, mu, std, logvar.
    Matmuls run in bf16 on the MXU with f32 accumulation; bias/ReLU/exp in f32.
    """

    def kernel(*refs):
        x_ref = refs[0]
        mu_ref, std_ref, logvar_ref = refs[-3], refs[-2], refs[-1]

        f = x_ref[...]                                    # f32 activations
        idx = 1
        for _ in range(num_layers):
            w_ref, b_ref = refs[idx], refs[idx + 1]
            idx += 2
            y = jnp.dot(f.astype(jnp.bfloat16), w_ref[...],
                        preferred_element_type=jnp.float32)
            f = jnp.maximum(y + b_ref[...], 0.0)          # bias + ReLU in f32

        wh_ref, bh_ref = refs[idx], refs[idx + 1]
        h = jnp.dot(f.astype(jnp.bfloat16), wh_ref[...],
                    preferred_element_type=jnp.float32) + bh_ref[...]
        mu = h[:, :e_out]                    # head cols [0:E)      -> mu
        logvar = h[:, e_pad:e_pad + e_out]   # head cols [ep:ep+E)  -> logvar
        mu_ref[...] = mu
        logvar_ref[...] = logvar
        std_ref[...] = jnp.exp(0.5 * logvar)  # EUP op: essentially free here

    return kernel


# ---------------------------------------------------------------------------
# Encoder module (parameter setup + forward, mirrors the torch module)
# ---------------------------------------------------------------------------

class Encoder:
    LANE = 128                 # pad hidden widths to full vreg lane width
    SINGLE_STEP_MAX = 256      # small batches: one grid step, zero padding
    TARGET_TILE = 1024         # large batches: up to 1024 rows per step
    VMEM_BUDGET = 24 * 1024 * 1024   # per-step budget, fits every generation

    def __init__(self, data_dim, compress_dims, embedding_dim, key):
        self.data_dim = int(data_dim)
        self.compress_dims = tuple(int(d) for d in compress_dims)
        self.embedding_dim = int(embedding_dim)

        # ----- unpadded f32 parameters (torch nn.Linear default init) -------
        self.layers = []
        dim = self.data_dim
        for item in self.compress_dims:
            key, kw, kb = jax.random.split(key, 3)
            bound = 1.0 / math.sqrt(dim)
            W = jax.random.uniform(kw, (dim, item), jnp.float32, -bound, bound)
            b = jax.random.uniform(kb, (1, item), jnp.float32, -bound, bound)
            self.layers.append((W, b))
            dim = item

        bound = 1.0 / math.sqrt(dim)
        key, k1w, k1b, k2w, k2b = jax.random.split(key, 5)
        E = self.embedding_dim
        self.fc1_w = jax.random.uniform(k1w, (dim, E), jnp.float32, -bound, bound)
        self.fc1_b = jax.random.uniform(k1b, (1, E), jnp.float32, -bound, bound)
        self.fc2_w = jax.random.uniform(k2w, (dim, E), jnp.float32, -bound, bound)
        self.fc2_b = jax.random.uniform(k2b, (1, E), jnp.float32, -bound, bound)

        # ----- kernel parameters: bf16 weights, f32 biases ------------------
        # First layer keeps its un-padded K (== data_dim; full-array block is
        # legal), hidden output widths are padded to 128 lanes so every later
        # matmul has an aligned K.  Padded lanes carry exact zeros (zero weight
        # columns + zero bias -> ReLU -> 0), so they never perturb results.
        L = self.LANE
        self.dp_hidden = [_round_up(d, L) for d in self.compress_dims]
        self.ep = _round_up(E, L)

        self.pad_layers = []
        kin = self.data_dim
        for (W, b), dout, dout_p in zip(self.layers, self.compress_dims,
                                        self.dp_hidden):
            Wp = (jnp.zeros((kin, dout_p), jnp.float32)
                  .at[:W.shape[0], :dout].set(W)).astype(jnp.bfloat16)
            bp = jnp.zeros((1, dout_p), jnp.float32).at[:, :dout].set(b)
            self.pad_layers.append((Wp, bp))
            kin = dout_p

        # Combined head: columns [0:E) -> mu, [ep:ep+E) -> logvar.
        self.head_w = (jnp.zeros((kin, 2 * self.ep), jnp.float32)
                       .at[:self.fc1_w.shape[0], :E].set(self.fc1_w)
                       .at[:self.fc1_w.shape[0], self.ep:self.ep + E].set(self.fc2_w)
                       ).astype(jnp.bfloat16)
        self.head_b = (jnp.zeros((1, 2 * self.ep), jnp.float32)
                       .at[:, :E].set(self.fc1_b)
                       .at[:, self.ep:self.ep + E].set(self.fc2_b))

    # ------------------------------------------------------------ VMEM guard
    def _vmem_bytes(self, tb):
        w = 0
        for Wp, bpad in self.pad_layers:
            w += Wp.size * Wp.dtype.itemsize + bpad.size * bpad.dtype.itemsize
        w += self.head_w.size * self.head_w.dtype.itemsize
        w += self.head_b.size * self.head_b.dtype.itemsize
        x = tb * self.data_dim * 4
        out = 3 * tb * self.embedding_dim * 4
        widest = max(self.dp_hidden + [2 * self.ep, self.data_dim])
        act = tb * widest * 4
        # Inputs / weights / outputs are double-buffered by the pipeline;
        # allow ~4 resident activation-sized temporaries (f, bf16 cast, y, h).
        return 2 * (x + w + out) + 4 * act

    def _choose_tile(self, B):
        if B <= self.SINGLE_STEP_MAX:
            tb, steps = B, 1                      # one step, no row padding
        else:
            # >=2 balanced steps so v7x's second TensorCore is fed; each step
            # at most TARGET_TILE rows (per-step overhead amortized).
            steps = max(2, _cdiv(B, self.TARGET_TILE))
            tb = _round_up(_cdiv(B, steps), 8)
            steps = _cdiv(B, tb)
        # v7x has only 64 MiB physical VMEM (32 MiB scoped default): shrink
        # the tile until the per-step footprint fits on every generation.
        while tb > 8 and self._vmem_bytes(tb) > self.VMEM_BUDGET:
            tb = _round_up(max(tb // 2, 8), 8)
            steps = _cdiv(B, tb)
        return tb, steps

    # --------------------------------------------------------------- forward
    def __call__(self, x):
        B = x.shape[0]
        E = self.embedding_dim
        tb, steps = self._choose_tile(B)
        bp = steps * tb

        x = x.astype(jnp.float32)
        if bp != B:
            # Only a row-pad for the ragged last tile; features never padded.
            x = jnp.pad(x, ((0, bp - B), (0, 0)))

        num_layers = len(self.pad_layers)
        kernel = _make_fused_kernel(num_layers, self.ep, E)

        def batch_spec(d):
            return pl.BlockSpec((tb, d), lambda i: (i, 0))

        def const_spec(shape):
            # Constant index_map -> loaded once, VMEM-resident across steps.
            return pl.BlockSpec(shape, lambda i: (0, 0))

        in_specs = [batch_spec(self.data_dim)]
        operands = [x]
        flops = 0
        bytes_accessed = x.size * 4
        for Wp, bpad in self.pad_layers:
            in_specs += [const_spec(Wp.shape), const_spec(bpad.shape)]
            operands += [Wp, bpad]
            flops += 2 * bp * Wp.shape[0] * Wp.shape[1]
            bytes_accessed += Wp.size * 2 + bpad.size * 4
        in_specs += [const_spec(self.head_w.shape), const_spec(self.head_b.shape)]
        operands += [self.head_w, self.head_b]
        flops += 2 * bp * self.head_w.shape[0] * self.head_w.shape[1]
        bytes_accessed += self.head_w.size * 2 + self.head_b.size * 4
        bytes_accessed += 3 * bp * E * 4   # mu / std / logvar writeback

        out_shape = tuple(jax.ShapeDtypeStruct((bp, E), jnp.float32)
                          for _ in range(3))
        out_specs = tuple(batch_spec(E) for _ in range(3))

        fused = pl.pallas_call(
            kernel,
            out_shape=out_shape,
            grid_spec=pltpu.PrefetchScalarGridSpec(
                num_scalar_prefetch=0,
                grid=(steps,),
                in_specs=in_specs,
                out_specs=out_specs,
            ),
            compiler_params=pltpu.CompilerParams(
                dimension_semantics=("parallel",)),
            cost_estimate=pl.CostEstimate(
                flops=int(flops),
                transcendentals=int(bp * E),
                bytes_accessed=int(bytes_accessed)),
        )
        mu, std, logvar = fused(*operands)

        if bp != B:
            mu, std, logvar = mu[:B], std[:B], logvar[:B]
        return mu, std, logvar


# ---------------------------------------------------------------------------
# Pure-JAX references for correctness checks
# ---------------------------------------------------------------------------

def encoder_ref(enc, x, matmul_dtype=jnp.float32):
    def mm(a, w):
        return jnp.dot(a.astype(matmul_dtype), w.astype(matmul_dtype),
                       preferred_element_type=jnp.float32)

    f = x.astype(jnp.float32)
    for W, b in enc.layers:
        f = jnp.maximum(mm(f, W) + b, 0.0)
    mu = mm(f, enc.fc1_w) + enc.fc1_b
    logvar = mm(f, enc.fc2_w) + enc.fc2_b
    return mu, jnp.exp(0.5 * logvar), logvar


if __name__ == "__main__":
    key = jax.random.PRNGKey(0)
    key, kx, kp = jax.random.split(key, 3)

    batch = 8
    data_dim = 32
    compress_dims = (64, 32)
    embedding_dim = 16

    x = jax.random.normal(kx, (batch, data_dim), dtype=jnp.float32)
    enc = Encoder(data_dim, compress_dims, embedding_dim, kp)

    mu, std, logvar = enc(x)
    jax.block_until_ready((mu, std, logvar))

    assert mu.shape == (batch, embedding_dim)
    assert std.shape == (batch, embedding_dim)
    assert logvar.shape == (batch, embedding_dim)

    # Tight check vs a reference that emulates the kernel's bf16 MXU matmuls.
    mu_b, std_b, lv_b = encoder_ref(enc, x, matmul_dtype=jnp.bfloat16)
    assert jnp.allclose(mu, mu_b, atol=2e-3, rtol=2e-3)
    assert jnp.allclose(std, std_b, atol=2e-3, rtol=2e-3)
    assert jnp.allclose(logvar, lv_b, atol=2e-3, rtol=2e-3)

    # Looser check vs the full-f32 reference (difference = bf16 MXU rounding).
    mu_r, std_r, lv_r = encoder_ref(enc, x)
    assert jnp.allclose(mu, mu_r, atol=5e-2, rtol=5e-2)
    assert jnp.allclose(std, std_r, atol=5e-2, rtol=5e-2)
    assert jnp.allclose(logvar, lv_r, atol=5e-2, rtol=5e-2)

    print("KERNEL_OK")
</pallas_src>

<mosaic_0001>
module attributes {stable_mosaic.version = 11 : i64} {
  func.func @kernel(%arg0: i32, %arg1: memref<8x32xf32, #tpu.memory_space<vmem>>, %arg2: memref<32x128xbf16, #tpu.memory_space<vmem>>, %arg3: memref<1x128xf32, #tpu.memory_space<vmem>>, %arg4: memref<128x128xbf16, #tpu.memory_space<vmem>>, %arg5: memref<1x128xf32, #tpu.memory_space<vmem>>, %arg6: memref<128x256xbf16, #tpu.memory_space<vmem>>, %arg7: memref<1x256xf32, #tpu.memory_space<vmem>>, %arg8: memref<8x16xf32, #tpu.memory_space<vmem>>, %arg9: memref<8x16xf32, #tpu.memory_space<vmem>>, %arg10: memref<8x16xf32, #tpu.memory_space<vmem>>) attributes {dimension_semantics = [#tpu.dimension_semantics<parallel>], iteration_bounds = array<i64: 1>, scalar_prefetch = 0 : i64, scratch_operands = 0 : i64, tpu.core_type = #tpu.core_type<tc>, window_params = [{transform_indices = @transform_0, window_bounds = array<i64: 8, 32>}, {pipeline_mode = #tpu.pipeline_mode<synchronous>, transform_indices = @transform_1, window_bounds = array<i64: 32, 128>}, {pipeline_mode = #tpu.pipeline_mode<synchronous>, transform_indices = @transform_2, window_bounds = array<i64: 1, 128>}, {pipeline_mode = #tpu.pipeline_mode<synchronous>, transform_indices = @transform_3, window_bounds = array<i64: 128, 128>}, {pipeline_mode = #tpu.pipeline_mode<synchronous>, transform_indices = @transform_4, window_bounds = array<i64: 1, 128>}, {pipeline_mode = #tpu.pipeline_mode<synchronous>, transform_indices = @transform_5, window_bounds = array<i64: 128, 256>}, {pipeline_mode = #tpu.pipeline_mode<synchronous>, transform_indices = @transform_6, window_bounds = array<i64: 1, 256>}, {transform_indices = @transform_7, window_bounds = array<i64: 8, 16>}, {transform_indices = @transform_8, window_bounds = array<i64: 8, 16>}, {transform_indices = @transform_9, window_bounds = array<i64: 8, 16>}]} {
    %c0 = arith.constant 0 : index
    %c0_0 = arith.constant 0 : index
    %0 = vector.load %arg1[%c0, %c0_0] : memref<8x32xf32, #tpu.memory_space<vmem>>, vector<8x32xf32>
    %1 = arith.truncf %0 : vector<8x32xf32> to vector<8x32xbf16>
    %c0_1 = arith.constant 0 : index
    %c0_2 = arith.constant 0 : index
    %2 = vector.load %arg2[%c0_1, %c0_2] : memref<32x128xbf16, #tpu.memory_space<vmem>>, vector<32x128xbf16>
    %cst = arith.constant dense<0.000000e+00> : vector<8x128xf32>
    %3 = tpu.matmul %1, %2, %cst {dimension_numbers = #tpu.dot_dimension_numbers<[1], [0], [0], [1], [0, 0, 1, 1], [], []>} : vector<8x32xbf16>, vector<32x128xbf16>, vector<8x128xf32> -> vector<8x128xf32>
    %c0_3 = arith.constant 0 : index
    %c0_4 = arith.constant 0 : index
    %4 = vector.load %arg3[%c0_3, %c0_4] : memref<1x128xf32, #tpu.memory_space<vmem>>, vector<1x128xf32>
    %5 = vector.broadcast %4 : vector<1x128xf32> to vector<8x128xf32>
    %6 = arith.addf %3, %5 : vector<8x128xf32>
    %cst_5 = arith.constant 0.000000e+00 : f32
    %7 = vector.broadcast %cst_5 : f32 to vector<8x128xf32>
    %8 = arith.maximumf %6, %7 : vector<8x128xf32>
    %9 = arith.truncf %8 : vector<8x128xf32> to vector<8x128xbf16>
    %c0_6 = arith.constant 0 : index
    %c0_7 = arith.constant 0 : index
    %10 = vector.load %arg4[%c0_6, %c0_7] : memref<128x128xbf16, #tpu.memory_space<vmem>>, vector<128x128xbf16>
    %cst_8 = arith.constant dense<0.000000e+00> : vector<8x128xf32>
    %11 = tpu.matmul %9, %10, %cst_8 {dimension_numbers = #tpu.dot_dimension_numbers<[1], [0], [0], [1], [0, 0, 1, 1], [], []>} : vector<8x128xbf16>, vector<128x128xbf16>, vector<8x128xf32> -> vector<8x128xf32>
    %c0_9 = arith.constant 0 : index
    %c0_10 = arith.constant 0 : index
    %12 = vector.load %arg5[%c0_9, %c0_10] : memref<1x128xf32, #tpu.memory_space<vmem>>, vector<1x128xf32>
    %13 = vector.broadcast %12 : vector<1x128xf32> to vector<8x128xf32>
    %14 = arith.addf %11, %13 : vector<8x128xf32>
    %cst_11 = arith.constant 0.000000e+00 : f32
    %15 = vector.broadcast %cst_11 : f32 to vector<8x128xf32>
    %16 = arith.maximumf %14, %15 : vector<8x128xf32>
    %17 = arith.truncf %16 : vector<8x128xf32> to vector<8x128xbf16>
    %c0_12 = arith.constant 0 : index
    %c0_13 = arith.constant 0 : index
    %18 = vector.load %arg6[%c0_12, %c0_13] : memref<128x256xbf16, #tpu.memory_space<vmem>>, vector<128x256xbf16>
    %cst_14 = arith.constant dense<0.000000e+00> : vector<8x256xf32>
    %19 = tpu.matmul %17, %18, %cst_14 {dimension_numbers = #tpu.dot_dimension_numbers<[1], [0], [0], [1], [0, 0, 1, 1], [], []>} : vector<8x128xbf16>, vector<128x256xbf16>, vector<8x256xf32> -> vector<8x256xf32>
    %c0_15 = arith.constant 0 : index
    %c0_16 = arith.constant 0 : index
    %20 = vector.load %arg7[%c0_15, %c0_16] : memref<1x256xf32, #tpu.memory_space<vmem>>, vector<1x256xf32>
    %21 = vector.broadcast %20 : vector<1x256xf32> to vector<8x256xf32>
    %22 = arith.addf %19, %21 : vector<8x256xf32>
    %23 = vector.extract_strided_slice %22 {offsets = [0, 0], sizes = [8, 16], strides = [1, 1]} : vector<8x256xf32> to vector<8x16xf32>
    %24 = vector.extract_strided_slice %22 {offsets = [0, 128], sizes = [8, 16], strides = [1, 1]} : vector<8x256xf32> to vector<8x16xf32>
    %c0_17 = arith.constant 0 : index
    %c0_18 = arith.constant 0 : index
    %25 = vector.load %arg8[%c0_17, %c0_18] : memref<8x16xf32, #tpu.memory_space<vmem>>, vector<8x16xf32>
    tpu.vector_store %arg8[%c0_17, %c0_18], %23 {strides = array<i32>} : memref<8x16xf32, #tpu.memory_space<vmem>>, vector<8x16xf32>,
    %c0_19 = arith.constant 0 : index
    %c0_20 = arith.constant 0 : index
    %26 = vector.load %arg10[%c0_19, %c0_20] : memref<8x16xf32, #tpu.memory_space<vmem>>, vector<8x16xf32>
    tpu.vector_store %arg10[%c0_19, %c0_20], %24 {strides = array<i32>} : memref<8x16xf32, #tpu.memory_space<vmem>>, vector<8x16xf32>,
    %cst_21 = arith.constant 5.000000e-01 : f32
    %27 = vector.broadcast %cst_21 : f32 to vector<8x16xf32>
    %28 = arith.mulf %27, %24 : vector<8x16xf32>
    %29 = math.exp %28 : vector<8x16xf32>
    %c0_22 = arith.constant 0 : index
    %c0_23 = arith.constant 0 : index
    %30 = vector.load %arg9[%c0_22, %c0_23] : memref<8x16xf32, #tpu.memory_space<vmem>>, vector<8x16xf32>
    tpu.vector_store %arg9[%c0_22, %c0_23], %29 {strides = array<i32>} : memref<8x16xf32, #tpu.memory_space<vmem>>, vector<8x16xf32>,
    return
  }
  func.func @transform_0(%arg0: i32) -> (i32, i32) {
    %c0_i32 = arith.constant 0 : i32
    %c0_i32_0 = arith.constant 0 : i32
    return %arg0, %c0_i32 : i32, i32
  }
  func.func @transform_1(%arg0: i32) -> (i32, i32) {
    %c0_i32 = arith.constant 0 : i32
    %c0_i32_0 = arith.constant 0 : i32
    %c0_i32_1 = arith.constant 0 : i32
    return %c0_i32, %c0_i32_0 : i32, i32
  }
  func.func @transform_2(%arg0: i32) -> (i32, i32) {
    %c0_i32 = arith.constant 0 : i32
    %c0_i32_0 = arith.constant 0 : i32
    %c0_i32_1 = arith.constant 0 : i32
    return %c0_i32, %c0_i32_0 : i32, i32
  }
  func.func @transform_3(%arg0: i32) -> (i32, i32) {
    %c0_i32 = arith.constant 0 : i32
    %c0_i32_0 = arith.constant 0 : i32
    %c0_i32_1 = arith.constant 0 : i32
    return %c0_i32, %c0_i32_0 : i32, i32
  }
  func.func @transform_4(%arg0: i32) -> (i32, i32) {
    %c0_i32 = arith.constant 0 : i32
    %c0_i32_0 = arith.constant 0 : i32
    %c0_i32_1 = arith.constant 0 : i32
    return %c0_i32, %c0_i32_0 : i32, i32
  }
  func.func @transform_5(%arg0: i32) -> (i32, i32) {
    %c0_i32 = arith.constant 0 : i32
    %c0_i32_0 = arith.constant 0 : i32
    %c0_i32_1 = arith.constant 0 : i32
    return %c0_i32, %c0_i32_0 : i32, i32
  }
  func.func @transform_6(%arg0: i32) -> (i32, i32) {
    %c0_i32 = arith.constant 0 : i32
    %c0_i32_0 = arith.constant 0 : i32
    %c0_i32_1 = arith.constant 0 : i32
    return %c0_i32, %c0_i32_0 : i32, i32
  }
  func.func @transform_7(%arg0: i32) -> (i32, i32) {
    %c0_i32 = arith.constant 0 : i32
    %c0_i32_0 = arith.constant 0 : i32
    return %arg0, %c0_i32 : i32, i32
  }
  func.func @transform_8(%arg0: i32) -> (i32, i32) {
    %c0_i32 = arith.constant 0 : i32
    %c0_i32_0 = arith.constant 0 : i32
    return %arg0, %c0_i32 : i32, i32
  }
  func.func @transform_9(%arg0: i32) -> (i32, i32) {
    %c0_i32 = arith.constant 0 : i32
    %c0_i32_0 = arith.constant 0 : i32
    return %arg0, %c0_i32 : i32, i32
  }
}

</mosaic_0001>

<llo_original>
// kernel: tpu_custom_call.1
$region0: #{tpu_custom_call.1}
  #allocation0 [shape = 'u32[]', space=smem, size = 0x4, offset = 0x4, fixed_abs, tag = 'smem constant byte address 0x4 - core index']
  #allocation1 [shape = 'u32[144,128]{1,0:T(1,128)}', space=vmem, size = 0x12000, scoped, tag = 'internal scratch']
  %s0 = inlined_call_operand.hbm [shape: f32[8,32], index: 0, kind: input, shape index: {}]
  %s1 = inlined_call_operand.hbm [shape: bf16[32,128], index: 1, kind: input, shape index: {}]
  %s2 = inlined_call_operand.vmem [shape: f32[1,128], index: 2, kind: input, shape index: {}]
  %s3 = inlined_call_operand.hbm [shape: bf16[128,128], index: 3, kind: input, shape index: {}]
  %s4 = inlined_call_operand.vmem [shape: f32[1,128], index: 4, kind: input, shape index: {}]
  %s5 = inlined_call_operand.hbm [shape: bf16[128,256], index: 5, kind: input, shape index: {}]
  %s6 = inlined_call_operand.vmem [shape: f32[1,256], index: 6, kind: input, shape index: {}]
  %s7 = inlined_call_operand.hbm [shape: f32[8,16], index: 7, kind: output, shape index: {0}]
  %s8 = inlined_call_operand.hbm [shape: f32[8,16], index: 8, kind: output, shape index: {1}]
  %s9 = inlined_call_operand.hbm [shape: f32[8,16], index: 9, kind: output, shape index: {2}]
  %10 = xla_tuple %s7, %s8, %s9
  %s11 = sld [smem:[#allocation0]]
  $region70: #{tpu_custom_call.1} parent=0
    _
  %s13 = ssub.s32 1, %s11
  %s14 = scalar_select 0, %s13, %s11
  $region1: #{tpu_custom_call.1} parent=0
    #allocation2 [shape = 'u8[4096]{0}', space=vmem, size = 0x1000, scoped, tag = 'input window, operand 0, single buffered']
    #allocation3 [shape = 's32[1]{0}', space=sflag, size = 0x4, scoped, tag = 'scoped memory for tpu_custom_call.1']
    #allocation4 [shape = 's32[1]{0}', space=sflag, size = 0x4, scoped, tag = 'scoped memory for tpu_custom_call.1']
    #allocation5 [shape = 'u8[8192]{0}', space=vmem, size = 0x2000, scoped, tag = 'input window, operand 1, single buffered']
    #allocation6 [shape = 's32[1]{0}', space=sflag, size = 0x4, scoped, tag = 'scoped memory for tpu_custom_call.1']
    #allocation7 [shape = 'u8[32768]{0}', space=vmem, size = 0x8000, scoped, tag = 'input window, operand 3, single buffered']
    #allocation8 [shape = 'u8[65536]{0}', space=vmem, size = 0x10000, scoped, tag = 'input window, operand 5, single buffered']
    #allocation9 [shape = 's32[1]{0}', space=sflag, size = 0x4, scoped, tag = 'scoped memory for tpu_custom_call.1']
    #allocation10 [shape = 'u8[4096]{0}', space=vmem, size = 0x1000, scoped, tag = 'output window, operand 0, single buffered']
    #allocation11 [shape = 'u8[4096]{0}', space=vmem, size = 0x1000, scoped, tag = 'output window, operand 1, single buffered']
    #allocation12 [shape = 's32[1]{0}', space=sflag, size = 0x4, scoped, tag = 'scoped memory for tpu_custom_call.1']
    #allocation13 [shape = 'u8[4096]{0}', space=vmem, size = 0x1000, scoped, tag = 'output window, operand 2, single buffered']
    %15 = vsyncpa [#allocation3], 0
    %16 = vsyncpa [#allocation6], 0
    %17 = vsyncpa [#allocation9], 0
    %18 = vsyncpa [#allocation4], 0
    %19 = vsyncpa [#allocation12], 0
    // Predicated region
    $region2: #{tpu_custom_call.1} parent=1 // pred_check
      _
    $region3: #{tpu_custom_call.1} parent=1 // pred_check_branch
      %21 = sbr.rel (0) target = $region5
    $region4: #{tpu_custom_call.1} parent=1 // pred_region
      %s23 = ssub.s32 128, 128
      %24 = vsyncadd [#allocation3], %s23
      %s26 = sshll.u32 [#allocation2], 4
      %s27 = int_to_ptr.vmem [resolvable:$true] %s26
      %29 = dma.hbm_to_vmem [thread:$0]  %s0, 128, %s27, [#allocation3]
    $region5: #{tpu_custom_call.1} parent=1 // pred_fallthru
      _
    // Predicated region
    $region6: #{tpu_custom_call.1} parent=1 // pred_check
      _
    $region7: #{tpu_custom_call.1} parent=1 // pred_check_branch
      %31 = sbr.rel (0) target = $region9
    $region8: #{tpu_custom_call.1} parent=1 // pred_region
      %s33 = ssub.s32 256, 256
      %34 = vsyncadd [#allocation6], %s33
      %s35 = sshll.u32 [#allocation5], 4
      %s36 = int_to_ptr.vmem [resolvable:$true] %s35
      %41 = dma.hbm_to_vmem [thread:$0]  %s1, 256, %s36, [#allocation6], 64, 64, 4
    $region9: #{tpu_custom_call.1} parent=1 // pred_fallthru
      _
    // Predicated region
    $region10: #{tpu_custom_call.1} parent=1 // pred_check
      _
    $region11: #{tpu_custom_call.1} parent=1 // pred_check_branch
      %43 = sbr.rel (0) target = $region13
    $region12: #{tpu_custom_call.1} parent=1 // pred_region
      _
    $region13: #{tpu_custom_call.1} parent=1 // pred_fallthru
      _
    // Predicated region
    $region14: #{tpu_custom_call.1} parent=1 // pred_check
      _
    $region15: #{tpu_custom_call.1} parent=1 // pred_check_branch
      %45 = sbr.rel (0) target = $region17
    $region16: #{tpu_custom_call.1} parent=1 // pred_region
      %s47 = ssub.s32 1024, 1024
      %48 = vsyncadd [#allocation6], %s47
      %s49 = sshll.u32 [#allocation7], 4
      %s50 = int_to_ptr.vmem [resolvable:$true] %s49
      %55 = dma.hbm_to_vmem [thread:$0]  %s3, 1024, %s50, [#allocation6], 64, 64, 4
    $region17: #{tpu_custom_call.1} parent=1 // pred_fallthru
      _
    // Predicated region
    $region18: #{tpu_custom_call.1} parent=1 // pred_check
      _
    $region19: #{tpu_custom_call.1} parent=1 // pred_check_branch
      %57 = sbr.rel (0) target = $region21
    $region20: #{tpu_custom_call.1} parent=1 // pred_region
      _
    $region21: #{tpu_custom_call.1} parent=1 // pred_fallthru
      _
    // Predicated region
    $region22: #{tpu_custom_call.1} parent=1 // pred_check
      _
    $region23: #{tpu_custom_call.1} parent=1 // pred_check_branch
      %59 = sbr.rel (0) target = $region25
    $region24: #{tpu_custom_call.1} parent=1 // pred_region
      %s61 = ssub.s32 2048, 2048
      %62 = vsyncadd [#allocation9], %s61
      %s63 = sshll.u32 [#allocation8], 4
      %s64 = int_to_ptr.vmem [resolvable:$true] %s63
      %69 = dma.hbm_to_vmem [thread:$0]  %s5, 2048, %s64, [#allocation9], 128, 128, 8
    $region25: #{tpu_custom_call.1} parent=1 // pred_fallthru
      _
    // Predicated region
    $region26: #{tpu_custom_call.1} parent=1 // pred_check
      _
    $region27: #{tpu_custom_call.1} parent=1 // pred_check_branch
      %71 = sbr.rel (0) target = $region29
    $region28: #{tpu_custom_call.1} parent=1 // pred_region
      _
    $region29: #{tpu_custom_call.1} parent=1 // pred_fallthru
      _
    // Predicated region
    $region30: #{tpu_custom_call.1} parent=1 // pred_check
      _
    $region31: #{tpu_custom_call.1} parent=1 // pred_check_branch
      %73 = sbr.rel (0) target = $region33
    $region32: #{tpu_custom_call.1} parent=1 // pred_region
      %74 = dma.done [#allocation3], 128
    $region33: #{tpu_custom_call.1} parent=1 // pred_fallthru
      _
    // Predicated region
    $region34: #{tpu_custom_call.1} parent=1 // pred_check
      _
    $region35: #{tpu_custom_call.1} parent=1 // pred_check_branch
      %76 = sbr.rel (0) target = $region37
    $region36: #{tpu_custom_call.1} parent=1 // pred_region
      %77 = dma.done [#allocation6], 256
    $region37: #{tpu_custom_call.1} parent=1 // pred_fallthru
      _
    // Predicated region
    $region38: #{tpu_custom_call.1} parent=1 // pred_check
      _
    $region39: #{tpu_custom_call.1} parent=1 // pred_check_branch
      %79 = sbr.rel (0) target = $region41
    $region40: #{tpu_custom_call.1} parent=1 // pred_region
      %80 = dma.done [#allocation6], 1024
    $region41: #{tpu_custom_call.1} parent=1 // pred_fallthru
      _
    // Predicated region
    $region42: #{tpu_custom_call.1} parent=1 // pred_check
      _
    $region43: #{tpu_custom_call.1} parent=1 // pred_check_branch
      %82 = sbr.rel (0) target = $region45
    $region44: #{tpu_custom_call.1} parent=1 // pred_region
      %83 = dma.done [#allocation9], 2048
    $region45: #{tpu_custom_call.1} parent=1 // pred_fallthru
      _
    %v85 = vld [vmem:[#allocation2] sm:$0xff]
    %v86 = vpack.c.bf16 %v85, %v85
    %v87 = vld [vmem:[#allocation5] sm:$0xf]
    %v88 = vld [vmem:[#allocation5 + $0x4] sm:$0xf]
    %v89 = vld [vmem:[#allocation5 + $0x8] sm:$0xf]
    %v90 = vld [vmem:[#allocation5 + $0xc] sm:$0xf]
    %v91 = vld [vmem:[%s2] sm:$0x1]
    %v93 = vlaneseq
    %v94 = vshrl.u32 %v93, 7
    %v95 = vsub.s32 0, %v94
    %v96 = vrot.slane %v91, %v95
    %v102 = vunpack.c.l.b16 %v87
    %v103 = vunpack.c.l.b16 %v88
    %v104 = vunpack.c.l.b16 %v89
    %v105 = vunpack.c.l.b16 %v90
    %v106 = vpack.c.b16 %v103, %v102
    %v107 = vpack.c.b16 %v105, %v104
    %vm110 = vcmask 261120
    %v112 = vsel %vm110, %v86, 0
    %114 = vmatprep.subr.bf16.mxu0 0
    %115 = vmatpush1.bf16.msra.mxu0 %v106
    %116 = vmatprep.subr.bf16.mxu0 0
    %117 = vmatpush1.bf16.msra.mxu0 %v107
    %118 = vmatprep.subr.bf16.mxu0 0
    %119 = vmatpush1.bf16.msra.mxu0 0
    %120 = vmatprep.subr.bf16.mxu0 0
    %121 = vmatpush1.bf16.msra.mxu0 0
    %122 = vmatprep.subr.bf16.mxu0 0
    %123 = vmatpush1.bf16.msra.mxu0 0
    %124 = vmatprep.subr.bf16.mxu0 0
    %125 = vmatpush1.bf16.msra.mxu0 0
    %126 = vmatprep.subr.bf16.mxu0 0
    %127 = vmatpush1.bf16.msra.mxu0 0
    %128 = vmatprep.subr.bf16.mxu0 0
    %129 = vmatpush1.bf16.msra.mxu0 0
    %130 = vmatprep.subr.bf16.mxu0 0
    %131 = vmatpush1.bf16.msra.mxu0 0
    %132 = vmatprep.subr.bf16.mxu0 0
    %133 = vmatpush1.bf16.msra.mxu0 0
    %134 = vmatprep.subr.bf16.mxu0 0
    %135 = vmatpush1.bf16.msra.mxu0 0
    %136 = vmatprep.subr.bf16.mxu0 0
    %137 = vmatpush1.bf16.msra.mxu0 0
    %138 = vmatprep.subr.bf16.mxu0 0
    %139 = vmatpush1.bf16.msra.mxu0 0
    %140 = vmatprep.subr.bf16.mxu0 0
    %141 = vmatpush1.bf16.msra.mxu0 0
    %142 = vmatprep.subr.bf16.mxu0 0
    %143 = vmatpush1.bf16.msra.mxu0 0
    %144 = vmatprep.subr.bf16.mxu0 0
    %145 = vmatpush1.bf16.msra.mxu0 0
    %146 = vmatprep.mubr.bf16.mxu0 0
    %147 = vmatmul.mubr.bf16.gmra.mrb[0].mxu0 %v112
    %v148 = vpop.f32.mrb[0].mxu0
    %v149 = vadd.f32 %v96, %v148
    %v150 = vpop.f32.mrb[0].mxu0
    %v151 = vpop.f32.mrb[0].mxu0
    %v152 = vpop.f32.mrb[0].mxu0
    %153 = vdwg.mxu0
    %v154 = vmax.f32 %v149, 0.0
    %v155 = vpack.c.bf16 %v154, %v154
    %v156 = vld [vmem:[#allocation7] sm:$0xf]
    %v157 = vld [vmem:[#allocation7 + $0x4] sm:$0xf]
    %v158 = vld [vmem:[#allocation7 + $0x8] sm:$0xf]
    %v159 = vld [vmem:[#allocation7 + $0xc] sm:$0xf]
    %v160 = vld [vmem:[#allocation7 + $0x10] sm:$0xf]
    %v161 = vld [vmem:[#allocation7 + $0x14] sm:$0xf]
    %v162 = vld [vmem:[#allocation7 + $0x18] sm:$0xf]
    %v163 = vld [vmem:[#allocation7 + $0x1c] sm:$0xf]
    %v164 = vld [vmem:[#allocation7 + $0x20] sm:$0xf]
    %v165 = vld [vmem:[#allocation7 + $0x24] sm:$0xf]
    %v166 = vld [vmem:[#allocation7 + $0x28] sm:$0xf]
    %v167 = vld [vmem:[#allocation7 + $0x2c] sm:$0xf]
    %v168 = vld [vmem:[#allocation7 + $0x30] sm:$0xf]
    %v169 = vld [vmem:[#allocation7 + $0x34] sm:$0xf]
    %v170 = vld [vmem:[#allocation7 + $0x38] sm:$0xf]
    %v171 = vld [vmem:[#allocation7 + $0x3c] sm:$0xf]
    %v172 = vld [vmem:[%s4] sm:$0x1]
    %v174 = vlaneseq
    %v175 = vshrl.u32 %v174, 7
    %v176 = vsub.s32 0, %v175
    %v177 = vrot.slane %v172, %v176
    %v195 = vunpack.c.l.b16 %v156
    %v196 = vunpack.c.l.b16 %v157
    %v197 = vunpack.c.l.b16 %v158
    %v198 = vunpack.c.l.b16 %v159
    %v199 = vunpack.c.l.b16 %v160
    %v200 = vunpack.c.l.b16 %v161
    %v201 = vunpack.c.l.b16 %v162
    %v202 = vunpack.c.l.b16 %v163
    %v203 = vunpack.c.l.b16 %v164
    %v204 = vunpack.c.l.b16 %v165
    %v205 = vunpack.c.l.b16 %v166
    %v206 = vunpack.c.l.b16 %v167
    %v207 = vunpack.c.l.b16 %v168
    %v208 = vunpack.c.l.b16 %v169
    %v209 = vunpack.c.l.b16 %v170
    %v210 = vunpack.c.l.b16 %v171
    %v211 = vpack.c.b16 %v196, %v195
    %v212 = vpack.c.b16 %v198, %v197
    %v213 = vpack.c.b16 %v200, %v199
    %v214 = vpack.c.b16 %v202, %v201
    %v215 = vpack.c.b16 %v204, %v203
    %v216 = vpack.c.b16 %v206, %v205
    %v217 = vpack.c.b16 %v208, %v207
    %v218 = vpack.c.b16 %v210, %v209
    %227 = vmatprep.subr.bf16.mxu0 0
    %228 = vmatpush1.bf16.msra.mxu0 %v211
    %229 = vmatprep.subr.bf16.mxu0 0
    %230 = vmatpush1.bf16.msra.mxu0 %v212
    %231 = vmatprep.subr.bf16.mxu0 0
    %232 = vmatpush1.bf16.msra.mxu0 %v213
    %233 = vmatprep.subr.bf16.mxu0 0
    %234 = vmatpush1.bf16.msra.mxu0 %v214
    %235 = vmatprep.subr.bf16.mxu0 0
    %236 = vmatpush1.bf16.msra.mxu0 %v215
    %237 = vmatprep.subr.bf16.mxu0 0
    %238 = vmatpush1.bf16.msra.mxu0 %v216
    %239 = vmatprep.subr.bf16.mxu0 0
    %240 = vmatpush1.bf16.msra.mxu0 %v217
    %241 = vmatprep.subr.bf16.mxu0 0
    %242 = vmatpush1.bf16.msra.mxu0 %v218
    %243 = vmatprep.subr.bf16.mxu0 0
    %244 = vmatpush1.bf16.msra.mxu0 0
    %245 = vmatprep.subr.bf16.mxu0 0
    %246 = vmatpush1.bf16.msra.mxu0 0
    %247 = vmatprep.subr.bf16.mxu0 0
    %248 = vmatpush1.bf16.msra.mxu0 0
    %249 = vmatprep.subr.bf16.mxu0 0
    %250 = vmatpush1.bf16.msra.mxu0 0
    %251 = vmatprep.subr.bf16.mxu0 0
    %252 = vmatpush1.bf16.msra.mxu0 0
    %253 = vmatprep.subr.bf16.mxu0 0
    %254 = vmatpush1.bf16.msra.mxu0 0
    %255 = vmatprep.subr.bf16.mxu0 0
    %256 = vmatpush1.bf16.msra.mxu0 0
    %257 = vmatprep.subr.bf16.mxu0 0
    %258 = vmatpush1.bf16.msra.mxu0 0
    %259 = vmatprep.mubr.bf16.mxu0 0
    %260 = vmatmul.mubr.bf16.gmra.mrb[0].mxu0 %v155
    %v261 = vpop.f32.mrb[0].mxu0
    %v262 = vadd.f32 %v177, %v261
    %v263 = vpop.f32.mrb[0].mxu0
    %v264 = vpop.f32.mrb[0].mxu0
    %v265 = vpop.f32.mrb[0].mxu0
    %266 = vdwg.mxu0
    %v267 = vmax.f32 %v262, 0.0
    %v268 = vpack.c.bf16 %v267, %v267
    %v269 = vld [vmem:[#allocation8] sm:$0xff]
    %v270 = vld [vmem:[#allocation8 + $0x8] sm:$0xff]
    %v271 = vld [vmem:[#allocation8 + $0x10] sm:$0xff]
    %v272 = vld [vmem:[#allocation8 + $0x18] sm:$0xff]
    %v273 = vld [vmem:[#allocation8 + $0x20] sm:$0xff]
    %v274 = vld [vmem:[#allocation8 + $0x28] sm:$0xff]
    %v275 = vld [vmem:[#allocation8 + $0x30] sm:$0xff]
    %v276 = vld [vmem:[#allocation8 + $0x38] sm:$0xff]
    %v277 = vld [vmem:[#allocation8 + $0x40] sm:$0xff]
    %v278 = vld [vmem:[#allocation8 + $0x48] sm:$0xff]
    %v279 = vld [vmem:[#allocation8 + $0x50] sm:$0xff]
    %v280 = vld [vmem:[#allocation8 + $0x58] sm:$0xff]
    %v281 = vld [vmem:[#allocation8 + $0x60] sm:$0xff]
    %v282 = vld [vmem:[#allocation8 + $0x68] sm:$0xff]
    %v283 = vld [vmem:[#allocation8 + $0x70] sm:$0xff]
    %v284 = vld [vmem:[#allocation8 + $0x78] sm:$0xff]
    %v285 = vld [vmem:[%s6] sm:$0x3]
    %v287 = vlaneseq
    %v288 = vshrl.u32 %v287, 7
    %v289 = vsub.s32 0, %v288
    %v290 = vrot.slane %v285, %v289
    %v291 = vlaneseq
    %v292 = vshrl.u32 %v291, 7
    %v293 = vsub.s32 1, %v292
    %v294 = vrot.slane %v285, %v293
    %v313 = vunpack.c.l.b16 %v269
    %v314 = vunpack.c.h.b16 %v269
    %v315 = vunpack.c.l.b16 %v270
    %v316 = vunpack.c.h.b16 %v270
    %v317 = vunpack.c.l.b16 %v271
    %v318 = vunpack.c.h.b16 %v271
    %v319 = vunpack.c.l.b16 %v272
    %v320 = vunpack.c.h.b16 %v272
    %v321 = vunpack.c.l.b16 %v273
    %v322 = vunpack.c.h.b16 %v273
    %v323 = vunpack.c.l.b16 %v274
    %v324 = vunpack.c.h.b16 %v274
    %v325 = vunpack.c.l.b16 %v275
    %v326 = vunpack.c.h.b16 %v275
    %v327 = vunpack.c.l.b16 %v276
    %v328 = vunpack.c.h.b16 %v276
    %v329 = vunpack.c.l.b16 %v277
    %v330 = vunpack.c.h.b16 %v277
    %v331 = vunpack.c.l.b16 %v278
    %v332 = vunpack.c.h.b16 %v278
    %v333 = vunpack.c.l.b16 %v279
    %v334 = vunpack.c.h.b16 %v279
    %v335 = vunpack.c.l.b16 %v280
    %v336 = vunpack.c.h.b16 %v280
    %v337 = vunpack.c.l.b16 %v281
    %v338 = vunpack.c.h.b16 %v281
    %v339 = vunpack.c.l.b16 %v282
    %v340 = vunpack.c.h.b16 %v282
    %v341 = vunpack.c.l.b16 %v283
    %v342 = vunpack.c.h.b16 %v283
    %v343 = vunpack.c.l.b16 %v284
    %v344 = vunpack.c.h.b16 %v284
    %v345 = vpack.c.b16 %v315, %v313
    %v346 = vpack.c.b16 %v316, %v314
    %v347 = vpack.c.b16 %v319, %v317
    %v348 = vpack.c.b16 %v320, %v318
    %v349 = vpack.c.b16 %v323, %v321
    %v350 = vpack.c.b16 %v324, %v322
    %v351 = vpack.c.b16 %v327, %v325
    %v352 = vpack.c.b16 %v328, %v326
    %v353 = vpack.c.b16 %v331, %v329
    %v354 = vpack.c.b16 %v332, %v330
    %v355 = vpack.c.b16 %v335, %v333
    %v356 = vpack.c.b16 %v336, %v334
    %v357 = vpack.c.b16 %v339, %v337
    %v358 = vpack.c.b16 %v340, %v338
    %v359 = vpack.c.b16 %v343, %v341
    %v360 = vpack.c.b16 %v344, %v342
    %377 = vmatprep.subr.bf16.mxu0 %v346
    %378 = vmatpush1.bf16.msra.mxu0 %v345
    %379 = vmatprep.subr.bf16.mxu0 %v348
    %380 = vmatpush1.bf16.msra.mxu0 %v347
    %381 = vmatprep.subr.bf16.mxu0 %v350
    %382 = vmatpush1.bf16.msra.mxu0 %v349
    %383 = vmatprep.subr.bf16.mxu0 %v352
    %384 = vmatpush1.bf16.msra.mxu0 %v351
    %385 = vmatprep.subr.bf16.mxu0 %v354
    %386 = vmatpush1.bf16.msra.mxu0 %v353
    %387 = vmatprep.subr.bf16.mxu0 %v356
    %388 = vmatpush1.bf16.msra.mxu0 %v355
    %389 = vmatprep.subr.bf16.mxu0 %v358
    %390 = vmatpush1.bf16.msra.mxu0 %v357
    %391 = vmatprep.subr.bf16.mxu0 %v360
    %392 = vmatpush1.bf16.msra.mxu0 %v359
    %393 = vmatprep.subr.bf16.mxu0 0
    %394 = vmatpush1.bf16.msra.mxu0 0
    %395 = vmatprep.subr.bf16.mxu0 0
    %396 = vmatpush1.bf16.msra.mxu0 0
    %397 = vmatprep.subr.bf16.mxu0 0
    %398 = vmatpush1.bf16.msra.mxu0 0
    %399 = vmatprep.subr.bf16.mxu0 0
    %400 = vmatpush1.bf16.msra.mxu0 0
    %401 = vmatprep.subr.bf16.mxu0 0
    %402 = vmatpush1.bf16.msra.mxu0 0
    %403 = vmatprep.subr.bf16.mxu0 0
    %404 = vmatpush1.bf16.msra.mxu0 0
    %405 = vmatprep.subr.bf16.mxu0 0
    %406 = vmatpush1.bf16.msra.mxu0 0
    %407 = vmatprep.subr.bf16.mxu0 0
    %408 = vmatpush1.bf16.msra.mxu0 0
    %409 = vmatprep.mubr.bf16.mxu0 0
    %410 = vmatmul.mubr.bf16.gmra.mrb[0].mxu0 %v268
    %v411 = vpop.f32.mrb[0].mxu0
    %v412 = vadd.f32 %v290, %v411
    %v413 = vpop.f32.mrb[0].mxu0
    %v414 = vadd.f32 %v294, %v413
    %v415 = vpop.f32.mrb[0].mxu0
    %v416 = vpop.f32.mrb[0].mxu0
    %417 = vdwg.mxu0
    %vm418 = vcmask 130048
    %419 = vst.msk [vmem:[#allocation10] sm:$0xff] %vm418, %v412
    %420 = vst.msk [vmem:[#allocation13] sm:$0xff] %vm418, %v414
    %v421 = vmul.f32 %v414, 0.5
    %v422 = vmul.f32 %v421, 1.442695
    %v423 = vpow.pop %v422
    %424 = vst.msk [vmem:[#allocation11] sm:$0xff] %vm418, %v423
    // Predicated region
    $region46: #{tpu_custom_call.1} parent=1 // pred_check
      _
    $region47: #{tpu_custom_call.1} parent=1 // pred_check_branch
      %426 = sbr.rel (0) target = $region49
    $region48: #{tpu_custom_call.1} parent=1 // pred_region
      %s428 = ssub.s32 128, 128
      %429 = vsyncadd [#allocation4], %s428
      %s431 = sshll.u32 [#allocation10], 4
      %s432 = int_to_ptr.vmem [resolvable:$true] %s431
      %434 = dma.vmem_to_hbm [thread:$0]  %s432, 128, %s7, [#allocation4]
    $region49: #{tpu_custom_call.1} parent=1 // pred_fallthru
      _
    // Predicated region
    $region50: #{tpu_custom_call.1} parent=1 // pred_check
      _
    $region51: #{tpu_custom_call.1} parent=1 // pred_check_branch
      %436 = sbr.rel (0) target = $region53
    $region52: #{tpu_custom_call.1} parent=1 // pred_region
      %s438 = ssub.s32 128, 128
      %439 = vsyncadd [#allocation12], %s438
      %s441 = sshll.u32 [#allocation11], 4
      %s442 = int_to_ptr.vmem [resolvable:$true] %s441
      %444 = dma.vmem_to_hbm [thread:$0]  %s442, 128, %s8, [#allocation12]
    $region53: #{tpu_custom_call.1} parent=1 // pred_fallthru
      _
    // Predicated region
    $region54: #{tpu_custom_call.1} parent=1 // pred_check
      _
    $region55: #{tpu_custom_call.1} parent=1 // pred_check_branch
      %446 = sbr.rel (0) target = $region57
    $region56: #{tpu_custom_call.1} parent=1 // pred_region
      %s448 = ssub.s32 128, 128
      %449 = vsyncadd [#allocation12], %s448
      %s451 = sshll.u32 [#allocation13], 4
      %s452 = int_to_ptr.vmem [resolvable:$true] %s451
      %454 = dma.vmem_to_hbm [thread:$0]  %s452, 128, %s9, [#allocation12]
    $region57: #{tpu_custom_call.1} parent=1 // pred_fallthru
      _
    // Predicated region
    $region58: #{tpu_custom_call.1} parent=1 // pred_check
      _
    $region59: #{tpu_custom_call.1} parent=1 // pred_check_branch
      %456 = sbr.rel (0) target = $region61
    $region60: #{tpu_custom_call.1} parent=1 // pred_region
      %457 = dma.done [#allocation4], 128
    $region61: #{tpu_custom_call.1} parent=1 // pred_fallthru
      _
    // Predicated region
    $region62: #{tpu_custom_call.1} parent=1 // pred_check
      _
    $region63: #{tpu_custom_call.1} parent=1 // pred_check_branch
      %459 = sbr.rel (0) target = $region65
    $region64: #{tpu_custom_call.1} parent=1 // pred_region
      %460 = dma.done [#allocation12], 128
    $region65: #{tpu_custom_call.1} parent=1 // pred_fallthru
      _
    // Predicated region
    $region66: #{tpu_custom_call.1} parent=1 // pred_check
      _
    $region67: #{tpu_custom_call.1} parent=1 // pred_check_branch
      %462 = sbr.rel (0) target = $region69
    $region68: #{tpu_custom_call.1} parent=1 // pred_region
      %463 = dma.done [#allocation12], 128
    $region69: #{tpu_custom_call.1} parent=1 // pred_fallthru
      _
    %464 = vsyncpa [#allocation3], 1
    %465 = vsyncpa [#allocation6], 1
    %466 = vsyncpa [#allocation9], 1
    %467 = vsyncpa [#allocation4], 1
    %468 = vsyncpa [#allocation12], 1

</llo_original>
